<compile_context>
chip_gen: v7x
topology: tpu7x:2x2x1
jax: 0.10.0
libtpu: 0.0.40
codegen_flags: <defaults>
</compile_context>

<pallas_src>
import jax
import jax.numpy as jnp
from jax import lax
from jax.experimental import pallas as pl
from jax.experimental.pallas import tpu as pltpu

PI = 3.1415926


def _round_up(x, m):
    return (x + m - 1) // m * m


def _make_kernel(n_layers, hidden_size, h0_is_zero, compute_dtype):
    H = hidden_size

    def mm(a, w):
        # MXU matmul; operands in compute_dtype, accumulation in f32.
        return jnp.dot(a.astype(compute_dtype), w, preferred_element_type=jnp.float32)

    def kernel(*refs):
        if h0_is_zero:
            (x_ref, we_ref, be_ref, wih_ref, bih_ref, bhhn_ref,
             wo_ref, bo_ref, wlie_ref, blie_ref, out_ref, hmid_ref) = refs
        else:
            (x_ref, we_ref, be_ref, wih_ref, bih_ref, whh_ref, bhhn_ref,
             h0_ref, wo_ref, bo_ref, wlie_ref, blie_ref, out_ref, hmid_ref) = refs

        # embed = Linear(I, H); all elementwise math stays in f32.
        h = mm(x_ref[...], we_ref[...]) + be_ref[...]            # (TB, H) f32

        # stacked GRUCell layers, fused gate columns (r | z | n)
        for l in range(n_layers):
            gi = mm(h, wih_ref[l]) + bih_ref[l]                  # (TB, 3H)
            if h0_is_zero:
                # hp == 0: drop the h_prev matmul; only b_hh_n survives under r*(.)
                r = jax.nn.sigmoid(gi[:, :H])
                z = jax.nn.sigmoid(gi[:, H:2 * H])
                n = jnp.tanh(gi[:, 2 * H:] + r * bhhn_ref[l])
                h = (1.0 - z) * n
            else:
                hp = h0_ref[l]                                   # (TB, H)
                gh = mm(hp, whh_ref[l])                          # (TB, 3H)
                r = jax.nn.sigmoid(gi[:, :H] + gh[:, :H])
                z = jax.nn.sigmoid(gi[:, H:2 * H] + gh[:, H:2 * H])
                n = jnp.tanh(gi[:, 2 * H:] + r * (gh[:, 2 * H:] + bhhn_ref[l]))
                h = (1.0 - z) * n + z * hp

        hmid_ref[...] = h

        # output / output_lie on a zero-padded, lane-dense (TB, 128k) slab.
        ho = mm(h, wo_ref[...]) + bo_ref[...]                    # (TB, OP)
        lie = jnp.tanh(mm(jnp.tanh(ho), wlie_ref[...]) + blie_ref[...]) * PI
        tb, op = out_ref.shape
        col = lax.broadcasted_iota(jnp.int32, (tb, op), 1)
        out_ref[...] = jnp.where(col < 3, ho, lie)               # cols >= O are 0

    return kernel


def decoder_gru_lie_forward(inputs, params, *, n_layers, h0=None,
                            compute_dtype=jnp.float32, tile_b=256):
    """inputs: any shape with trailing dim == input_size.
    h0: None (== init_hidden() zeros, fast path) or (n_layers, B_flat, H).
    Returns (output (B_flat, O), h_mid (B_flat, H)), both float32."""
    we, be, wih, bih, whh, bhh, wo, bo, wlie, blie = params
    I, H = we.shape
    O = wo.shape[1]
    L = n_layers
    OP = _round_up(O, 128)                      # lane-dense output slab width

    x = inputs.reshape(-1, I).astype(jnp.float32)
    B = x.shape[0]
    TILE_B = min(tile_b, _round_up(B, 8))
    Bp = _round_up(B, TILE_B)
    if Bp != B:
        x = jnp.pad(x, ((0, Bp - B), (0, 0)))

    # pre-fold the r/z hidden-side biases into the input-side bias
    bih_f = bih.at[:, :, :2 * H].add(bhh[:, :, :2 * H])          # (L,1,3H)
    bhh_n = bhh[:, :, 2 * H:]                                    # (L,1,H)

    # zero-pad the output heads to OP lanes (sliced back in the wrapper)
    wo_p = jnp.zeros((H, OP), jnp.float32).at[:, :O].set(wo)
    bo_p = jnp.zeros((1, OP), jnp.float32).at[:, :O].set(bo)
    wlie_p = jnp.zeros((OP, OP), jnp.float32).at[3:O, 3:O].set(wlie)
    blie_p = jnp.zeros((1, OP), jnp.float32).at[:, 3:O].set(blie)

    wd = compute_dtype
    we_c, wih_c, whh_c = we.astype(wd), wih.astype(wd), whh.astype(wd)
    wo_c, wlie_c = wo_p.astype(wd), wlie_p.astype(wd)

    h0_is_zero = h0 is None
    if not h0_is_zero:
        h0 = h0.astype(jnp.float32)
        if h0.shape[1] != Bp:
            h0 = jnp.pad(h0, ((0, 0), (0, Bp - h0.shape[1]), (0, 0)))

    def wspec(shape):
        # weights/biases: full-array block, constant index -> VMEM-resident.
        return pl.BlockSpec(shape, lambda i: (0,) * len(shape))

    in_arrays = [x, we_c, be, wih_c, bih_f]
    in_specs = [
        pl.BlockSpec((TILE_B, I), lambda i: (i, 0)),
        wspec((I, H)),
        wspec((1, H)),
        wspec((L, H, 3 * H)),
        wspec((L, 1, 3 * H)),
    ]
    if not h0_is_zero:
        in_arrays.append(whh_c)
        in_specs.append(wspec((L, H, 3 * H)))
    in_arrays.append(bhh_n)
    in_specs.append(wspec((L, 1, H)))
    if not h0_is_zero:
        in_arrays.append(h0)
        in_specs.append(pl.BlockSpec((L, TILE_B, H), lambda i: (0, i, 0)))
    in_arrays += [wo_c, bo_p, wlie_c, blie_p]
    in_specs += [wspec((H, OP)), wspec((1, OP)), wspec((OP, OP)), wspec((1, OP))]
    # TODO(synk): if H grows large (e.g. >=1024 on v7x's 64 MiB VMEM), stream the
    # GRU weights per layer (BlockSpec over L / emit_pipeline) instead of keeping
    # all layers VMEM-resident.

    out_specs = (pl.BlockSpec((TILE_B, OP), lambda i: (i, 0)),
                 pl.BlockSpec((TILE_B, H), lambda i: (i, 0)))
    out_shape = (jax.ShapeDtypeStruct((Bp, OP), jnp.float32),
                 jax.ShapeDtypeStruct((Bp, H), jnp.float32))

    gru_sides = 1 if h0_is_zero else 2
    flops = 2 * Bp * (I * H + L * gru_sides * 3 * H * H + H * OP + OP * OP)
    transcendentals = Bp * (L * 3 * H + 2 * OP)
    bytes_in = sum(int(a.size) * int(a.dtype.itemsize) for a in in_arrays)
    bytes_out = Bp * (OP + H) * 4
    cost = pl.CostEstimate(flops=flops, transcendentals=transcendentals,
                           bytes_accessed=bytes_in + bytes_out)

    kernel = _make_kernel(n_layers, H, h0_is_zero, compute_dtype)
    out_p, hmid_p = pl.pallas_call(
        kernel,
        grid=(Bp // TILE_B,),
        in_specs=in_specs,
        out_specs=out_specs,
        out_shape=out_shape,
        compiler_params=pltpu.CompilerParams(
            dimension_semantics=("parallel",)),   # batch tiles -> both TCs on v7x
        cost_estimate=cost,
    )(*in_arrays)
    return out_p[:B, :O], hmid_p[:B]


def init_params(key, input_size, output_size, hidden_size, n_layers):
    """Deterministic synthetic parameters in the fused layout documented above."""
    I, O, H, L = input_size, output_size, hidden_size, n_layers
    ks = jax.random.split(key, 10)

    def unif(k, shape, fan_in):
        bound = 1.0 / jnp.sqrt(jnp.float32(fan_in))
        return jax.random.uniform(k, shape, jnp.float32, -bound, bound)

    we = unif(ks[0], (I, H), I)
    be = unif(ks[1], (1, H), I)
    wih = unif(ks[2], (L, H, 3 * H), H)
    bih = unif(ks[3], (L, 1, 3 * H), H)
    whh = unif(ks[4], (L, H, 3 * H), H)
    bhh = unif(ks[5], (L, 1, 3 * H), H)
    wo = unif(ks[6], (H, O), H)
    bo = unif(ks[7], (1, O), H)
    wlie = unif(ks[8], (O - 3, O - 3), O - 3)
    blie = unif(ks[9], (1, O - 3), O - 3)
    return (we, be, wih, bih, whh, bhh, wo, bo, wlie, blie)


def reference_forward(inputs, params, *, n_layers, h0=None):
    """Pure-JAX f32 reference reproducing the PyTorch forward exactly."""
    we, be, wih, bih, whh, bhh, wo, bo, wlie, blie = params
    I, H = we.shape
    x = inputs.reshape(-1, I).astype(jnp.float32)
    B = x.shape[0]
    if h0 is None:
        h0 = jnp.zeros((n_layers, B, H), jnp.float32)     # init_hidden()
    h = x @ we + be
    for l in range(n_layers):
        hp = h0[l]
        gi = h @ wih[l] + bih[l]
        gh = hp @ whh[l] + bhh[l]
        r = jax.nn.sigmoid(gi[:, :H] + gh[:, :H])
        z = jax.nn.sigmoid(gi[:, H:2 * H] + gh[:, H:2 * H])
        n = jnp.tanh(gi[:, 2 * H:] + r * gh[:, 2 * H:])
        h = (1.0 - z) * n + z * hp
    ho = h @ wo + bo
    root_trans = ho[:, :3]
    lie_out = jnp.tanh(jnp.tanh(ho[:, 3:]) @ wlie + blie) * PI
    return jnp.concatenate([root_trans, lie_out], axis=-1), h


if __name__ == "__main__":
    input_size, output_size, hidden_size, n_layers, batch_size = 16, 27, 32, 2, 2

    key = jax.random.PRNGKey(0)
    k_param, k_in, k_h, k_in2 = jax.random.split(key, 4)
    params = init_params(k_param, input_size, output_size, hidden_size, n_layers)
    inputs = jax.random.normal(k_in, (batch_size, input_size), jnp.float32)

    # 1) module default: hidden = init_hidden() zeros -> specialized fast path
    out, h_mid = decoder_gru_lie_forward(inputs, params, n_layers=n_layers)
    jax.block_until_ready((out, h_mid))
    ref_out, ref_h = reference_forward(inputs, params, n_layers=n_layers)
    assert out.shape == (batch_size, output_size)
    assert h_mid.shape == (batch_size, hidden_size)
    assert jnp.allclose(out, ref_out, atol=3e-5, rtol=3e-5)
    assert jnp.allclose(h_mid, ref_h, atol=3e-5, rtol=3e-5)

    # 2) general path with a caller-provided (nonzero) hidden state
    h0 = 0.1 * jax.random.normal(k_h, (n_layers, batch_size, hidden_size), jnp.float32)
    out_g, h_g = decoder_gru_lie_forward(inputs, params, n_layers=n_layers, h0=h0)
    ref_out_g, ref_h_g = reference_forward(inputs, params, n_layers=n_layers, h0=h0)
    assert jnp.allclose(out_g, ref_out_g, atol=3e-5, rtol=3e-5)
    assert jnp.allclose(h_g, ref_h_g, atol=3e-5, rtol=3e-5)

    # 3) multi-tile grid: larger flattened batch (inputs.view(-1, I) over a sequence)
    big_in = jax.random.normal(k_in2, (3, 200, input_size), jnp.float32)  # B_flat=600
    out_b, h_b = decoder_gru_lie_forward(big_in, params, n_layers=n_layers)
    ref_out_b, ref_h_b = reference_forward(big_in, params, n_layers=n_layers)
    assert out_b.shape == (600, output_size) and h_b.shape == (600, hidden_size)
    assert jnp.allclose(out_b, ref_out_b, atol=3e-5, rtol=3e-5)
    assert jnp.allclose(h_b, ref_h_b, atol=3e-5, rtol=3e-5)

    # 4) bf16 weights (v6e/v7x MXU rate), f32 accumulation + f32 elementwise
    out_bf, h_bf = decoder_gru_lie_forward(inputs, params, n_layers=n_layers,
                                           compute_dtype=jnp.bfloat16)
    assert jnp.allclose(out_bf, ref_out, atol=0.1, rtol=0.1)
    assert jnp.allclose(h_bf, ref_h, atol=0.1, rtol=0.1)

    print("KERNEL_OK")
</pallas_src>

<mosaic_0001>
module attributes {stable_mosaic.version = 11 : i64} {
  func.func @kernel(%arg0: i32, %arg1: memref<8x16xf32, #tpu.memory_space<vmem>>, %arg2: memref<16x32xf32, #tpu.memory_space<vmem>>, %arg3: memref<1x32xf32, #tpu.memory_space<vmem>>, %arg4: memref<2x32x96xf32, #tpu.memory_space<vmem>>, %arg5: memref<2x1x96xf32, #tpu.memory_space<vmem>>, %arg6: memref<2x1x32xf32, #tpu.memory_space<vmem>>, %arg7: memref<32x128xf32, #tpu.memory_space<vmem>>, %arg8: memref<1x128xf32, #tpu.memory_space<vmem>>, %arg9: memref<128x128xf32, #tpu.memory_space<vmem>>, %arg10: memref<1x128xf32, #tpu.memory_space<vmem>>, %arg11: memref<8x128xf32, #tpu.memory_space<vmem>>, %arg12: memref<8x32xf32, #tpu.memory_space<vmem>>) attributes {dimension_semantics = [#tpu.dimension_semantics<parallel>], iteration_bounds = array<i64: 1>, scalar_prefetch = 0 : i64, scratch_operands = 0 : i64, tpu.core_type = #tpu.core_type<tc>, window_params = [{transform_indices = @transform_0, window_bounds = array<i64: 8, 16>}, {pipeline_mode = #tpu.pipeline_mode<synchronous>, transform_indices = @transform_1, window_bounds = array<i64: 16, 32>}, {pipeline_mode = #tpu.pipeline_mode<synchronous>, transform_indices = @transform_2, window_bounds = array<i64: 1, 32>}, {pipeline_mode = #tpu.pipeline_mode<synchronous>, transform_indices = @transform_3, window_bounds = array<i64: 2, 32, 96>}, {pipeline_mode = #tpu.pipeline_mode<synchronous>, transform_indices = @transform_4, window_bounds = array<i64: 2, 1, 96>}, {pipeline_mode = #tpu.pipeline_mode<synchronous>, transform_indices = @transform_5, window_bounds = array<i64: 2, 1, 32>}, {pipeline_mode = #tpu.pipeline_mode<synchronous>, transform_indices = @transform_6, window_bounds = array<i64: 32, 128>}, {pipeline_mode = #tpu.pipeline_mode<synchronous>, transform_indices = @transform_7, window_bounds = array<i64: 1, 128>}, {pipeline_mode = #tpu.pipeline_mode<synchronous>, transform_indices = @transform_8, window_bounds = array<i64: 128, 128>}, {pipeline_mode = #tpu.pipeline_mode<synchronous>, transform_indices = @transform_9, window_bounds = array<i64: 1, 128>}, {transform_indices = @transform_10, window_bounds = array<i64: 8, 128>}, {transform_indices = @transform_11, window_bounds = array<i64: 8, 32>}]} {
    %c0 = arith.constant 0 : index
    %c0_0 = arith.constant 0 : index
    %0 = vector.load %arg1[%c0, %c0_0] : memref<8x16xf32, #tpu.memory_space<vmem>>, vector<8x16xf32>
    %c0_1 = arith.constant 0 : index
    %c0_2 = arith.constant 0 : index
    %1 = vector.load %arg2[%c0_1, %c0_2] : memref<16x32xf32, #tpu.memory_space<vmem>>, vector<16x32xf32>
    %cst = arith.constant dense<0.000000e+00> : vector<8x32xf32>
    %2 = tpu.matmul %0, %1, %cst {dimension_numbers = #tpu.dot_dimension_numbers<[1], [0], [0], [1], [0, 0, 1, 1], [], []>} : vector<8x16xf32>, vector<16x32xf32>, vector<8x32xf32> -> vector<8x32xf32>
    %c0_3 = arith.constant 0 : index
    %c0_4 = arith.constant 0 : index
    %3 = vector.load %arg3[%c0_3, %c0_4] : memref<1x32xf32, #tpu.memory_space<vmem>>, vector<1x32xf32>
    %4 = vector.broadcast %3 : vector<1x32xf32> to vector<8x32xf32>
    %5 = arith.addf %2, %4 : vector<8x32xf32>
    %c0_5 = arith.constant 0 : index
    %c0_6 = arith.constant 0 : index
    %c0_7 = arith.constant 0 : index
    %6 = vector.load %arg4[%c0_5, %c0_6, %c0_7] : memref<2x32x96xf32, #tpu.memory_space<vmem>>, vector<1x32x96xf32>
    %7 = vector.shape_cast %6 : vector<1x32x96xf32> to vector<32x96xf32>
    %cst_8 = arith.constant dense<0.000000e+00> : vector<8x96xf32>
    %8 = tpu.matmul %5, %7, %cst_8 {dimension_numbers = #tpu.dot_dimension_numbers<[1], [0], [0], [1], [0, 0, 1, 1], [], []>} : vector<8x32xf32>, vector<32x96xf32>, vector<8x96xf32> -> vector<8x96xf32>
    %c0_9 = arith.constant 0 : index
    %c0_10 = arith.constant 0 : index
    %c0_11 = arith.constant 0 : index
    %9 = vector.load %arg5[%c0_9, %c0_10, %c0_11] : memref<2x1x96xf32, #tpu.memory_space<vmem>>, vector<1x1x96xf32>
    %10 = vector.shape_cast %9 : vector<1x1x96xf32> to vector<1x96xf32>
    %11 = vector.broadcast %10 : vector<1x96xf32> to vector<8x96xf32>
    %12 = arith.addf %8, %11 : vector<8x96xf32>
    %13 = vector.extract_strided_slice %12 {offsets = [0, 0], sizes = [8, 32], strides = [1, 1]} : vector<8x96xf32> to vector<8x32xf32>
    %14 = arith.negf %13 : vector<8x32xf32>
    %15 = math.exp %14 : vector<8x32xf32>
    %cst_12 = arith.constant 1.000000e+00 : f32
    %16 = vector.broadcast %cst_12 : f32 to vector<8x32xf32>
    %17 = arith.addf %16, %15 : vector<8x32xf32>
    %18 = arith.divf %16, %17 : vector<8x32xf32>
    %19 = vector.extract_strided_slice %12 {offsets = [0, 32], sizes = [8, 32], strides = [1, 1]} : vector<8x96xf32> to vector<8x32xf32>
    %20 = arith.negf %19 : vector<8x32xf32>
    %21 = math.exp %20 : vector<8x32xf32>
    %cst_13 = arith.constant 1.000000e+00 : f32
    %22 = vector.broadcast %cst_13 : f32 to vector<8x32xf32>
    %23 = arith.addf %22, %21 : vector<8x32xf32>
    %24 = arith.divf %22, %23 : vector<8x32xf32>
    %25 = vector.extract_strided_slice %12 {offsets = [0, 64], sizes = [8, 32], strides = [1, 1]} : vector<8x96xf32> to vector<8x32xf32>
    %c0_14 = arith.constant 0 : index
    %c0_15 = arith.constant 0 : index
    %c0_16 = arith.constant 0 : index
    %26 = vector.load %arg6[%c0_14, %c0_15, %c0_16] : memref<2x1x32xf32, #tpu.memory_space<vmem>>, vector<1x1x32xf32>
    %27 = vector.shape_cast %26 : vector<1x1x32xf32> to vector<1x32xf32>
    %28 = vector.broadcast %27 : vector<1x32xf32> to vector<8x32xf32>
    %29 = arith.mulf %18, %28 : vector<8x32xf32>
    %30 = arith.addf %25, %29 : vector<8x32xf32>
    %31 = math.tanh %30 : vector<8x32xf32>
    %cst_17 = arith.constant 1.000000e+00 : f32
    %32 = vector.broadcast %cst_17 : f32 to vector<8x32xf32>
    %33 = arith.subf %32, %24 : vector<8x32xf32>
    %34 = arith.mulf %33, %31 : vector<8x32xf32>
    %c1 = arith.constant 1 : index
    %c0_18 = arith.constant 0 : index
    %c0_19 = arith.constant 0 : index
    %35 = vector.load %arg4[%c1, %c0_18, %c0_19] : memref<2x32x96xf32, #tpu.memory_space<vmem>>, vector<1x32x96xf32>
    %36 = vector.shape_cast %35 : vector<1x32x96xf32> to vector<32x96xf32>
    %cst_20 = arith.constant dense<0.000000e+00> : vector<8x96xf32>
    %37 = tpu.matmul %34, %36, %cst_20 {dimension_numbers = #tpu.dot_dimension_numbers<[1], [0], [0], [1], [0, 0, 1, 1], [], []>} : vector<8x32xf32>, vector<32x96xf32>, vector<8x96xf32> -> vector<8x96xf32>
    %c1_21 = arith.constant 1 : index
    %c0_22 = arith.constant 0 : index
    %c0_23 = arith.constant 0 : index
    %38 = vector.load %arg5[%c1_21, %c0_22, %c0_23] : memref<2x1x96xf32, #tpu.memory_space<vmem>>, vector<1x1x96xf32>
    %39 = vector.shape_cast %38 : vector<1x1x96xf32> to vector<1x96xf32>
    %40 = vector.broadcast %39 : vector<1x96xf32> to vector<8x96xf32>
    %41 = arith.addf %37, %40 : vector<8x96xf32>
    %42 = vector.extract_strided_slice %41 {offsets = [0, 0], sizes = [8, 32], strides = [1, 1]} : vector<8x96xf32> to vector<8x32xf32>
    %43 = arith.negf %42 : vector<8x32xf32>
    %44 = math.exp %43 : vector<8x32xf32>
    %cst_24 = arith.constant 1.000000e+00 : f32
    %45 = vector.broadcast %cst_24 : f32 to vector<8x32xf32>
    %46 = arith.addf %45, %44 : vector<8x32xf32>
    %47 = arith.divf %45, %46 : vector<8x32xf32>
    %48 = vector.extract_strided_slice %41 {offsets = [0, 32], sizes = [8, 32], strides = [1, 1]} : vector<8x96xf32> to vector<8x32xf32>
    %49 = arith.negf %48 : vector<8x32xf32>
    %50 = math.exp %49 : vector<8x32xf32>
    %cst_25 = arith.constant 1.000000e+00 : f32
    %51 = vector.broadcast %cst_25 : f32 to vector<8x32xf32>
    %52 = arith.addf %51, %50 : vector<8x32xf32>
    %53 = arith.divf %51, %52 : vector<8x32xf32>
    %54 = vector.extract_strided_slice %41 {offsets = [0, 64], sizes = [8, 32], strides = [1, 1]} : vector<8x96xf32> to vector<8x32xf32>
    %c1_26 = arith.constant 1 : index
    %c0_27 = arith.constant 0 : index
    %c0_28 = arith.constant 0 : index
    %55 = vector.load %arg6[%c1_26, %c0_27, %c0_28] : memref<2x1x32xf32, #tpu.memory_space<vmem>>, vector<1x1x32xf32>
    %56 = vector.shape_cast %55 : vector<1x1x32xf32> to vector<1x32xf32>
    %57 = vector.broadcast %56 : vector<1x32xf32> to vector<8x32xf32>
    %58 = arith.mulf %47, %57 : vector<8x32xf32>
    %59 = arith.addf %54, %58 : vector<8x32xf32>
    %60 = math.tanh %59 : vector<8x32xf32>
    %cst_29 = arith.constant 1.000000e+00 : f32
    %61 = vector.broadcast %cst_29 : f32 to vector<8x32xf32>
    %62 = arith.subf %61, %53 : vector<8x32xf32>
    %63 = arith.mulf %62, %60 : vector<8x32xf32>
    %c0_30 = arith.constant 0 : index
    %c0_31 = arith.constant 0 : index
    %64 = vector.load %arg12[%c0_30, %c0_31] : memref<8x32xf32, #tpu.memory_space<vmem>>, vector<8x32xf32>
    tpu.vector_store %arg12[%c0_30, %c0_31], %63 {strides = array<i32>} : memref<8x32xf32, #tpu.memory_space<vmem>>, vector<8x32xf32>,
    %c0_32 = arith.constant 0 : index
    %c0_33 = arith.constant 0 : index
    %65 = vector.load %arg7[%c0_32, %c0_33] : memref<32x128xf32, #tpu.memory_space<vmem>>, vector<32x128xf32>
    %cst_34 = arith.constant dense<0.000000e+00> : vector<8x128xf32>
    %66 = tpu.matmul %63, %65, %cst_34 {dimension_numbers = #tpu.dot_dimension_numbers<[1], [0], [0], [1], [0, 0, 1, 1], [], []>} : vector<8x32xf32>, vector<32x128xf32>, vector<8x128xf32> -> vector<8x128xf32>
    %c0_35 = arith.constant 0 : index
    %c0_36 = arith.constant 0 : index
    %67 = vector.load %arg8[%c0_35, %c0_36] : memref<1x128xf32, #tpu.memory_space<vmem>>, vector<1x128xf32>
    %68 = vector.broadcast %67 : vector<1x128xf32> to vector<8x128xf32>
    %69 = arith.addf %66, %68 : vector<8x128xf32>
    %70 = math.tanh %69 : vector<8x128xf32>
    %c0_37 = arith.constant 0 : index
    %c0_38 = arith.constant 0 : index
    %71 = vector.load %arg9[%c0_37, %c0_38] : memref<128x128xf32, #tpu.memory_space<vmem>>, vector<128x128xf32>
    %cst_39 = arith.constant dense<0.000000e+00> : vector<8x128xf32>
    %72 = tpu.matmul %70, %71, %cst_39 {dimension_numbers = #tpu.dot_dimension_numbers<[1], [0], [0], [1], [0, 0, 1, 1], [], []>} : vector<8x128xf32>, vector<128x128xf32>, vector<8x128xf32> -> vector<8x128xf32>
    %c0_40 = arith.constant 0 : index
    %c0_41 = arith.constant 0 : index
    %73 = vector.load %arg10[%c0_40, %c0_41] : memref<1x128xf32, #tpu.memory_space<vmem>>, vector<1x128xf32>
    %74 = vector.broadcast %73 : vector<1x128xf32> to vector<8x128xf32>
    %75 = arith.addf %72, %74 : vector<8x128xf32>
    %76 = math.tanh %75 : vector<8x128xf32>
    %cst_42 = arith.constant 3.1415925 : f32
    %77 = vector.broadcast %cst_42 : f32 to vector<8x128xf32>
    %78 = arith.mulf %76, %77 : vector<8x128xf32>
    %79 = tpu.iota {dimensions = array<i32: 1>} : vector<8x128xi32>
    %c3_i32 = arith.constant 3 : i32
    %80 = vector.broadcast %c3_i32 : i32 to vector<8x128xi32>
    %81 = arith.cmpi slt, %79, %80 : vector<8x128xi32>
    %82 = arith.select %81, %69, %78 : vector<8x128xi1>, vector<8x128xf32>
    %c0_43 = arith.constant 0 : index
    %c0_44 = arith.constant 0 : index
    %83 = vector.load %arg11[%c0_43, %c0_44] : memref<8x128xf32, #tpu.memory_space<vmem>>, vector<8x128xf32>
    tpu.vector_store %arg11[%c0_43, %c0_44], %82 {strides = array<i32>} : memref<8x128xf32, #tpu.memory_space<vmem>>, vector<8x128xf32>,
    return
  }
  func.func @transform_0(%arg0: i32) -> (i32, i32) {
    %c0_i32 = arith.constant 0 : i32
    %c0_i32_0 = arith.constant 0 : i32
    return %arg0, %c0_i32 : i32, i32
  }
  func.func @transform_1(%arg0: i32) -> (i32, i32) {
    %c0_i32 = arith.constant 0 : i32
    %c0_i32_0 = arith.constant 0 : i32
    %c0_i32_1 = arith.constant 0 : i32
    return %c0_i32, %c0_i32_0 : i32, i32
  }
  func.func @transform_2(%arg0: i32) -> (i32, i32) {
    %c0_i32 = arith.constant 0 : i32
    %c0_i32_0 = arith.constant 0 : i32
    %c0_i32_1 = arith.constant 0 : i32
    return %c0_i32, %c0_i32_0 : i32, i32
  }
  func.func @transform_3(%arg0: i32) -> (i32, i32, i32) {
    %c0_i32 = arith.constant 0 : i32
    %c0_i32_0 = arith.constant 0 : i32
    %c0_i32_1 = arith.constant 0 : i32
    %c0_i32_2 = arith.constant 0 : i32
    return %c0_i32, %c0_i32_0, %c0_i32_1 : i32, i32, i32
  }
  func.func @transform_4(%arg0: i32) -> (i32, i32, i32) {
    %c0_i32 = arith.constant 0 : i32
    %c0_i32_0 = arith.constant 0 : i32
    %c0_i32_1 = arith.constant 0 : i32
    %c0_i32_2 = arith.constant 0 : i32
    return %c0_i32, %c0_i32_0, %c0_i32_1 : i32, i32, i32
  }
  func.func @transform_5(%arg0: i32) -> (i32, i32, i32) {
    %c0_i32 = arith.constant 0 : i32
    %c0_i32_0 = arith.constant 0 : i32
    %c0_i32_1 = arith.constant 0 : i32
    %c0_i32_2 = arith.constant 0 : i32
    return %c0_i32, %c0_i32_0, %c0_i32_1 : i32, i32, i32
  }
  func.func @transform_6(%arg0: i32) -> (i32, i32) {
    %c0_i32 = arith.constant 0 : i32
    %c0_i32_0 = arith.constant 0 : i32
    %c0_i32_1 = arith.constant 0 : i32
    return %c0_i32, %c0_i32_0 : i32, i32
  }
  func.func @transform_7(%arg0: i32) -> (i32, i32) {
    %c0_i32 = arith.constant 0 : i32
    %c0_i32_0 = arith.constant 0 : i32
    %c0_i32_1 = arith.constant 0 : i32
    return %c0_i32, %c0_i32_0 : i32, i32
  }
  func.func @transform_8(%arg0: i32) -> (i32, i32) {
    %c0_i32 = arith.constant 0 : i32
    %c0_i32_0 = arith.constant 0 : i32
    %c0_i32_1 = arith.constant 0 : i32
    return %c0_i32, %c0_i32_0 : i32, i32
  }
  func.func @transform_9(%arg0: i32) -> (i32, i32) {
    %c0_i32 = arith.constant 0 : i32
    %c0_i32_0 = arith.constant 0 : i32
    %c0_i32_1 = arith.constant 0 : i32
    return %c0_i32, %c0_i32_0 : i32, i32
  }
  func.func @transform_10(%arg0: i32) -> (i32, i32) {
    %c0_i32 = arith.constant 0 : i32
    %c0_i32_0 = arith.constant 0 : i32
    return %arg0, %c0_i32 : i32, i32
  }
  func.func @transform_11(%arg0: i32) -> (i32, i32) {
    %c0_i32 = arith.constant 0 : i32
    %c0_i32_0 = arith.constant 0 : i32
    return %arg0, %c0_i32 : i32, i32
  }
}

</mosaic_0001>

<llo_original>
// kernel: tpu_custom_call.1
$region0: #{tpu_custom_call.1}
  #allocation0 [shape = 'u32[]', space=smem, size = 0x4, offset = 0x4, fixed_abs, tag = 'smem constant byte address 0x4 - core index']
  #allocation1 [shape = 'u32[144,128]{1,0:T(1,128)}', space=vmem, size = 0x12000, scoped, tag = 'internal scratch']
  %s0 = inlined_call_operand.hbm [shape: f32[8,16], index: 0, kind: input, shape index: {}]
  %s1 = inlined_call_operand.hbm [shape: f32[16,32], index: 1, kind: input, shape index: {}]
  %s2 = inlined_call_operand.vmem [shape: f32[1,32], index: 2, kind: input, shape index: {}]
  %s3 = inlined_call_operand.hbm [shape: f32[2,32,96], index: 3, kind: input, shape index: {}]
  %s4 = inlined_call_operand.vmem [shape: f32[2,1,96], index: 4, kind: input, shape index: {}]
  %s5 = inlined_call_operand.vmem [shape: f32[2,1,32], index: 5, kind: input, shape index: {}]
  %s6 = inlined_call_operand.hbm [shape: f32[32,128], index: 6, kind: input, shape index: {}]
  %s7 = inlined_call_operand.vmem [shape: f32[1,128], index: 7, kind: input, shape index: {}]
  %s8 = inlined_call_operand.hbm [shape: f32[128,128], index: 8, kind: input, shape index: {}]
  %s9 = inlined_call_operand.vmem [shape: f32[1,128], index: 9, kind: input, shape index: {}]
  %s10 = inlined_call_operand.hbm [shape: f32[8,128], index: 10, kind: output, shape index: {0}]
  %s11 = inlined_call_operand.hbm [shape: f32[8,32], index: 11, kind: output, shape index: {1}]
  %12 = xla_tuple %s10, %s11
  %s13 = sld [smem:[#allocation0]]
  $region78: #{tpu_custom_call.1} parent=0
    _
  %s15 = ssub.s32 1, %s13
  %s16 = scalar_select 0, %s15, %s13
  $region1: #{tpu_custom_call.1} parent=0
    #allocation2 [shape = 'u8[4096]{0}', space=vmem, size = 0x1000, scoped, tag = 'input window, operand 0, single buffered']
    #allocation3 [shape = 's32[1]{0}', space=sflag, size = 0x4, scoped, tag = 'scoped memory for tpu_custom_call.1']
    #allocation4 [shape = 's32[1]{0}', space=sflag, size = 0x4, scoped, tag = 'scoped memory for tpu_custom_call.1']
    #allocation5 [shape = 'u8[8192]{0}', space=vmem, size = 0x2000, scoped, tag = 'input window, operand 1, single buffered']
    #allocation6 [shape = 's32[1]{0}', space=sflag, size = 0x4, scoped, tag = 'scoped memory for tpu_custom_call.1']
    #allocation7 [shape = 'u8[32768]{0}', space=vmem, size = 0x8000, scoped, tag = 'input window, operand 3, single buffered']
    #allocation8 [shape = 'u8[16384]{0}', space=vmem, size = 0x4000, scoped, tag = 'input window, operand 6, single buffered']
    #allocation9 [shape = 's32[1]{0}', space=sflag, size = 0x4, scoped, tag = 'scoped memory for tpu_custom_call.1']
    #allocation10 [shape = 'u8[65536]{0}', space=vmem, size = 0x10000, scoped, tag = 'input window, operand 8, single buffered']
    #allocation11 [shape = 'u8[4096]{0}', space=vmem, size = 0x1000, scoped, tag = 'output window, operand 0, single buffered']
    #allocation12 [shape = 'u8[4096]{0}', space=vmem, size = 0x1000, scoped, tag = 'output window, operand 1, single buffered']
    #allocation13 [shape = 's32[1]{0}', space=sflag, size = 0x4, scoped, tag = 'scoped memory for tpu_custom_call.1']
    %17 = vsyncpa [#allocation3], 0
    %18 = vsyncpa [#allocation6], 0
    %19 = vsyncpa [#allocation9], 0
    %20 = vsyncpa [#allocation4], 0
    %21 = vsyncpa [#allocation13], 0
    // Predicated region
    $region2: #{tpu_custom_call.1} parent=1 // pred_check
      _
    $region3: #{tpu_custom_call.1} parent=1 // pred_check_branch
      %23 = sbr.rel (0) target = $region5
    $region4: #{tpu_custom_call.1} parent=1 // pred_region
      %s25 = ssub.s32 128, 128
      %26 = vsyncadd [#allocation3], %s25
      %s28 = sshll.u32 [#allocation2], 4
      %s29 = int_to_ptr.vmem [resolvable:$true] %s28
      %31 = dma.hbm_to_vmem [thread:$0]  %s0, 128, %s29, [#allocation3]
    $region5: #{tpu_custom_call.1} parent=1 // pred_fallthru
      _
    // Predicated region
    $region6: #{tpu_custom_call.1} parent=1 // pred_check
      _
    $region7: #{tpu_custom_call.1} parent=1 // pred_check_branch
      %33 = sbr.rel (0) target = $region9
    $region8: #{tpu_custom_call.1} parent=1 // pred_region
      %s35 = ssub.s32 256, 256
      %36 = vsyncadd [#allocation6], %s35
      %s37 = sshll.u32 [#allocation5], 4
      %s38 = int_to_ptr.vmem [resolvable:$true] %s37
      %43 = dma.hbm_to_vmem [thread:$0]  %s1, 256, %s38, [#allocation6], 128, 128, 8
    $region9: #{tpu_custom_call.1} parent=1 // pred_fallthru
      _
    // Predicated region
    $region10: #{tpu_custom_call.1} parent=1 // pred_check
      _
    $region11: #{tpu_custom_call.1} parent=1 // pred_check_branch
      %45 = sbr.rel (0) target = $region13
    $region12: #{tpu_custom_call.1} parent=1 // pred_region
      _
    $region13: #{tpu_custom_call.1} parent=1 // pred_fallthru
      _
    // Predicated region
    $region14: #{tpu_custom_call.1} parent=1 // pred_check
      _
    $region15: #{tpu_custom_call.1} parent=1 // pred_check_branch
      %47 = sbr.rel (0) target = $region17
    $region16: #{tpu_custom_call.1} parent=1 // pred_region
      %s49 = ssub.s32 1024, 1024
      %50 = vsyncadd [#allocation6], %s49
      %s51 = sshll.u32 [#allocation7], 4
      %s52 = int_to_ptr.vmem [resolvable:$true] %s51
      %57 = dma.hbm_to_vmem [thread:$0]  %s3, 1024, %s52, [#allocation6], 128, 128, 8
    $region17: #{tpu_custom_call.1} parent=1 // pred_fallthru
      _
    // Predicated region
    $region18: #{tpu_custom_call.1} parent=1 // pred_check
      _
    $region19: #{tpu_custom_call.1} parent=1 // pred_check_branch
      %59 = sbr.rel (0) target = $region21
    $region20: #{tpu_custom_call.1} parent=1 // pred_region
      _
    $region21: #{tpu_custom_call.1} parent=1 // pred_fallthru
      _
    // Predicated region
    $region22: #{tpu_custom_call.1} parent=1 // pred_check
      _
    $region23: #{tpu_custom_call.1} parent=1 // pred_check_branch
      %61 = sbr.rel (0) target = $region25
    $region24: #{tpu_custom_call.1} parent=1 // pred_region
      _
    $region25: #{tpu_custom_call.1} parent=1 // pred_fallthru
      _
    // Predicated region
    $region26: #{tpu_custom_call.1} parent=1 // pred_check
      _
    $region27: #{tpu_custom_call.1} parent=1 // pred_check_branch
      %63 = sbr.rel (0) target = $region29
    $region28: #{tpu_custom_call.1} parent=1 // pred_region
      %s65 = ssub.s32 512, 512
      %66 = vsyncadd [#allocation9], %s65
      %s67 = sshll.u32 [#allocation8], 4
      %s68 = int_to_ptr.vmem [resolvable:$true] %s67
      %73 = dma.hbm_to_vmem [thread:$0]  %s6, 512, %s68, [#allocation9], 128, 128, 8
    $region29: #{tpu_custom_call.1} parent=1 // pred_fallthru
      _
    // Predicated region
    $region30: #{tpu_custom_call.1} parent=1 // pred_check
      _
    $region31: #{tpu_custom_call.1} parent=1 // pred_check_branch
      %75 = sbr.rel (0) target = $region33
    $region32: #{tpu_custom_call.1} parent=1 // pred_region
      _
    $region33: #{tpu_custom_call.1} parent=1 // pred_fallthru
      _
    // Predicated region
    $region34: #{tpu_custom_call.1} parent=1 // pred_check
      _
    $region35: #{tpu_custom_call.1} parent=1 // pred_check_branch
      %77 = sbr.rel (0) target = $region37
    $region36: #{tpu_custom_call.1} parent=1 // pred_region
      %s79 = ssub.s32 2048, 2048
      %80 = vsyncadd [#allocation9], %s79
      %s81 = sshll.u32 [#allocation10], 4
      %s82 = int_to_ptr.vmem [resolvable:$true] %s81
      %87 = dma.hbm_to_vmem [thread:$0]  %s8, 2048, %s82, [#allocation9], 128, 128, 8
    $region37: #{tpu_custom_call.1} parent=1 // pred_fallthru
      _
    // Predicated region
    $region38: #{tpu_custom_call.1} parent=1 // pred_check
      _
    $region39: #{tpu_custom_call.1} parent=1 // pred_check_branch
      %89 = sbr.rel (0) target = $region41
    $region40: #{tpu_custom_call.1} parent=1 // pred_region
      _
    $region41: #{tpu_custom_call.1} parent=1 // pred_fallthru
      _
    // Predicated region
    $region42: #{tpu_custom_call.1} parent=1 // pred_check
      _
    $region43: #{tpu_custom_call.1} parent=1 // pred_check_branch
      %91 = sbr.rel (0) target = $region45
    $region44: #{tpu_custom_call.1} parent=1 // pred_region
      %92 = dma.done [#allocation3], 128
    $region45: #{tpu_custom_call.1} parent=1 // pred_fallthru
      _
    // Predicated region
    $region46: #{tpu_custom_call.1} parent=1 // pred_check
      _
    $region47: #{tpu_custom_call.1} parent=1 // pred_check_branch
      %94 = sbr.rel (0) target = $region49
    $region48: #{tpu_custom_call.1} parent=1 // pred_region
      %95 = dma.done [#allocation6], 256
    $region49: #{tpu_custom_call.1} parent=1 // pred_fallthru
      _
    // Predicated region
    $region50: #{tpu_custom_call.1} parent=1 // pred_check
      _
    $region51: #{tpu_custom_call.1} parent=1 // pred_check_branch
      %97 = sbr.rel (0) target = $region53
    $region52: #{tpu_custom_call.1} parent=1 // pred_region
      %98 = dma.done [#allocation6], 1024
    $region53: #{tpu_custom_call.1} parent=1 // pred_fallthru
      _
    // Predicated region
    $region54: #{tpu_custom_call.1} parent=1 // pred_check
      _
    $region55: #{tpu_custom_call.1} parent=1 // pred_check_branch
      %100 = sbr.rel (0) target = $region57
    $region56: #{tpu_custom_call.1} parent=1 // pred_region
      %101 = dma.done [#allocation9], 512
    $region57: #{tpu_custom_call.1} parent=1 // pred_fallthru
      _
    // Predicated region
    $region58: #{tpu_custom_call.1} parent=1 // pred_check
      _
    $region59: #{tpu_custom_call.1} parent=1 // pred_check_branch
      %103 = sbr.rel (0) target = $region61
    $region60: #{tpu_custom_call.1} parent=1 // pred_region
      %104 = dma.done [#allocation9], 2048
    $region61: #{tpu_custom_call.1} parent=1 // pred_fallthru
      _
    %v105 = vld [vmem:[#allocation2] sm:$0xff]
    %v106 = vld [vmem:[#allocation5] sm:$0xff]
    %v107 = vld [vmem:[#allocation5 + $0x8] sm:$0xff]
    %v108 = vld [vmem:[%s2] sm:$0x1]
    %v110 = vlaneseq
    %v111 = vshrl.u32 %v110, 7
    %v112 = vsub.s32 0, %v111
    %v113 = vrot.slane %v108, %v112
    %vm115 = vcmask 130048
    %v117 = vsel %vm115, %v105, 0
    %119 = vmatprep.subr.mxu0 0.0
    %120 = vmatpush1.msra.mxu0 %v106
    %121 = vmatprep.subr.mxu0 0.0
    %122 = vmatpush1.msra.mxu0 %v107
    %123 = vmatprep.subr.mxu0 0.0
    %124 = vmatpush1.msra.mxu0 0.0
    %125 = vmatprep.subr.mxu0 0.0
    %126 = vmatpush1.msra.mxu0 0.0
    %127 = vmatprep.subr.mxu0 0.0
    %128 = vmatpush1.msra.mxu0 0.0
    %129 = vmatprep.subr.mxu0 0.0
    %130 = vmatpush1.msra.mxu0 0.0
    %131 = vmatprep.subr.mxu0 0.0
    %132 = vmatpush1.msra.mxu0 0.0
    %133 = vmatprep.subr.mxu0 0.0
    %134 = vmatpush1.msra.mxu0 0.0
    %135 = vmatprep.subr.mxu0 0.0
    %136 = vmatpush1.msra.mxu0 0.0
    %137 = vmatprep.subr.mxu0 0.0
    %138 = vmatpush1.msra.mxu0 0.0
    %139 = vmatprep.subr.mxu0 0.0
    %140 = vmatpush1.msra.mxu0 0.0
    %141 = vmatprep.subr.mxu0 0.0
    %142 = vmatpush1.msra.mxu0 0.0
    %143 = vmatprep.subr.mxu0 0.0
    %144 = vmatpush1.msra.mxu0 0.0
    %145 = vmatprep.subr.mxu0 0.0
    %146 = vmatpush1.msra.mxu0 0.0
    %147 = vmatprep.subr.mxu0 0.0
    %148 = vmatpush1.msra.mxu0 0.0
    %149 = vmatprep.subr.mxu0 0.0
    %150 = vmatpush1.msra.mxu0 0.0
    %151 = vmatprep.subr.mxu0 0.0
    %152 = vmatpush1.msra.mxu0 0.0
    %153 = vmatprep.subr.mxu0 0.0
    %154 = vmatpush1.msra.mxu0 0.0
    %155 = vmatprep.subr.mxu0 0.0
    %156 = vmatpush1.msra.mxu0 0.0
    %157 = vmatprep.subr.mxu0 0.0
    %158 = vmatpush1.msra.mxu0 0.0
    %159 = vmatprep.subr.mxu0 0.0
    %160 = vmatpush1.msra.mxu0 0.0
    %161 = vmatprep.subr.mxu0 0.0
    %162 = vmatpush1.msra.mxu0 0.0
    %163 = vmatprep.subr.mxu0 0.0
    %164 = vmatpush1.msra.mxu0 0.0
    %165 = vmatprep.subr.mxu0 0.0
    %166 = vmatpush1.msra.mxu0 0.0
    %167 = vmatprep.subr.mxu0 0.0
    %168 = vmatpush1.msra.mxu0 0.0
    %169 = vmatprep.subr.mxu0 0.0
    %170 = vmatpush1.msra.mxu0 0.0
    %171 = vmatprep.subr.mxu0 0.0
    %172 = vmatpush1.msra.mxu0 0.0
    %173 = vmatprep.subr.mxu0 0.0
    %174 = vmatpush1.msra.mxu0 0.0
    %175 = vmatprep.subr.mxu0 0.0
    %176 = vmatpush1.msra.mxu0 0.0
    %177 = vmatprep.subr.mxu0 0.0
    %178 = vmatpush1.msra.mxu0 0.0
    %179 = vmatprep.subr.mxu0 0.0
    %180 = vmatpush1.msra.mxu0 0.0
    %181 = vmatprep.subr.mxu0 0.0
    %182 = vmatpush1.msra.mxu0 0.0
    %183 = vmatprep.mubr.f32.mxu0 0.0
    %184 = vmatmul.mubr.f32.gmra.mrb[0].mxu0 %v117
    %v185 = vpop.f32.mrb[0].mxu0
    %v186 = vadd.f32 %v113, %v185
    %v187 = vpop.f32.mrb[0].mxu0
    %188 = vdwg.mxu0
    %v189 = vld [vmem:[#allocation7] sm:$0xff]
    %v190 = vld [vmem:[#allocation7 + $0x8] sm:$0xff]
    %v191 = vld [vmem:[#allocation7 + $0x10] sm:$0xff]
    %v192 = vld [vmem:[#allocation7 + $0x18] sm:$0xff]
    %v193 = vld [vmem:[%s4] sm:$0x1]
    %v195 = vlaneseq
    %v196 = vshrl.u32 %v195, 7
    %v197 = vsub.s32 0, %v196
    %v198 = vrot.slane %v193, %v197
    %vm200 = vcmask 261120
    %v202 = vsel %vm200, %v186, 0
    %204 = vmatprep.subr.mxu0 0.0
    %205 = vmatpush1.msra.mxu0 %v189
    %206 = vmatprep.subr.mxu0 0.0
    %207 = vmatpush1.msra.mxu0 %v190
    %208 = vmatprep.subr.mxu0 0.0
    %209 = vmatpush1.msra.mxu0 %v191
    %210 = vmatprep.subr.mxu0 0.0
    %211 = vmatpush1.msra.mxu0 %v192
    %212 = vmatprep.subr.mxu0 0.0
    %213 = vmatpush1.msra.mxu0 0.0
    %214 = vmatprep.subr.mxu0 0.0
    %215 = vmatpush1.msra.mxu0 0.0
    %216 = vmatprep.subr.mxu0 0.0
    %217 = vmatpush1.msra.mxu0 0.0
    %218 = vmatprep.subr.mxu0 0.0
    %219 = vmatpush1.msra.mxu0 0.0
    %220 = vmatprep.subr.mxu0 0.0
    %221 = vmatpush1.msra.mxu0 0.0
    %222 = vmatprep.subr.mxu0 0.0
    %223 = vmatpush1.msra.mxu0 0.0
    %224 = vmatprep.subr.mxu0 0.0
    %225 = vmatpush1.msra.mxu0 0.0
    %226 = vmatprep.subr.mxu0 0.0
    %227 = vmatpush1.msra.mxu0 0.0
    %228 = vmatprep.subr.mxu0 0.0
    %229 = vmatpush1.msra.mxu0 0.0
    %230 = vmatprep.subr.mxu0 0.0
    %231 = vmatpush1.msra.mxu0 0.0
    %232 = vmatprep.subr.mxu0 0.0
    %233 = vmatpush1.msra.mxu0 0.0
    %234 = vmatprep.subr.mxu0 0.0
    %235 = vmatpush1.msra.mxu0 0.0
    %236 = vmatprep.subr.mxu0 0.0
    %237 = vmatpush1.msra.mxu0 0.0
    %238 = vmatprep.subr.mxu0 0.0
    %239 = vmatpush1.msra.mxu0 0.0
    %240 = vmatprep.subr.mxu0 0.0
    %241 = vmatpush1.msra.mxu0 0.0
    %242 = vmatprep.subr.mxu0 0.0
    %243 = vmatpush1.msra.mxu0 0.0
    %244 = vmatprep.subr.mxu0 0.0
    %245 = vmatpush1.msra.mxu0 0.0
    %246 = vmatprep.subr.mxu0 0.0
    %247 = vmatpush1.msra.mxu0 0.0
    %248 = vmatprep.subr.mxu0 0.0
    %249 = vmatpush1.msra.mxu0 0.0
    %250 = vmatprep.subr.mxu0 0.0
    %251 = vmatpush1.msra.mxu0 0.0
    %252 = vmatprep.subr.mxu0 0.0
    %253 = vmatpush1.msra.mxu0 0.0
    %254 = vmatprep.subr.mxu0 0.0
    %255 = vmatpush1.msra.mxu0 0.0
    %256 = vmatprep.subr.mxu0 0.0
    %257 = vmatpush1.msra.mxu0 0.0
    %258 = vmatprep.subr.mxu0 0.0
    %259 = vmatpush1.msra.mxu0 0.0
    %260 = vmatprep.subr.mxu0 0.0
    %261 = vmatpush1.msra.mxu0 0.0
    %262 = vmatprep.subr.mxu0 0.0
    %263 = vmatpush1.msra.mxu0 0.0
    %264 = vmatprep.subr.mxu0 0.0
    %265 = vmatpush1.msra.mxu0 0.0
    %266 = vmatprep.subr.mxu0 0.0
    %267 = vmatpush1.msra.mxu0 0.0
    %268 = vmatprep.mubr.f32.mxu0 0.0
    %269 = vmatmul.mubr.f32.gmra.mrb[0].mxu0 %v202
    %v270 = vpop.f32.mrb[0].mxu0
    %v271 = vadd.f32 %v198, %v270
    %v272 = vpop.f32.mrb[0].mxu0
    %273 = vdwg.mxu0
    %v274 = vxor.u32 %v271, 2147483648
    %v275 = vmul.f32 %v274, 1.442695
    %v276 = vpow.pop %v275
    %v277 = vadd.f32 %v276, 1.0
    %v278 = vrcp.pop %v277
    %v279 = vmul.f32 1.0, %v278
    %v280 = vld [vmem:[%s5] sm:$0x1]
    %v282 = vlaneseq
    %v283 = vshrl.u32 %v282, 7
    %v284 = vsub.s32 0, %v283
    %v285 = vrot.slane %v280, %v284
    %v287 = vmul.f32 %v279, %v285
    %289 = vrot.lane.b32.xlu0 %v287, 64
    %v290 = vpop.permute.xlu0 %289
    %v292 = vadd.f32 %v271, %v290
    %v293 = vtanh.pop %v292
    %v294 = vsub.f32 1.0, %v279
    %296 = vrot.lane.b32.xlu0 %v293, 96
    %v297 = vpop.permute.xlu0 %296
    %v299 = vmul.f32 %v294, %v297
    %s300 = scalar_lea.vmem [#allocation7], 32
    %v301 = vld [vmem:[%s300] sm:$0xff]
    %v302 = vld [vmem:[%s300 + $0x8] sm:$0xff]
    %v303 = vld [vmem:[%s300 + $0x10] sm:$0xff]
    %v304 = vld [vmem:[%s300 + $0x18] sm:$0xff]
    %s305 = scalar_lea.vmem %s4, 1
    %v306 = vld [vmem:[%s305] sm:$0x1]
    %v308 = vlaneseq
    %v309 = vshrl.u32 %v308, 7
    %v310 = vsub.s32 0, %v309
    %v311 = vrot.slane %v306, %v310
    %314 = vrot.lane.b32.xlu0 %v299, 96
    %v315 = vpop.permute.xlu0 %314
    %v316 = vsel %vm200, %v315, 0
    %318 = vmatprep.subr.mxu0 0.0
    %319 = vmatpush1.msra.mxu0 %v301
    %320 = vmatprep.subr.mxu0 0.0
    %321 = vmatpush1.msra.mxu0 %v302
    %322 = vmatprep.subr.mxu0 0.0
    %323 = vmatpush1.msra.mxu0 %v303
    %324 = vmatprep.subr.mxu0 0.0
    %325 = vmatpush1.msra.mxu0 %v304
    %326 = vmatprep.subr.mxu0 0.0
    %327 = vmatpush1.msra.mxu0 0.0
    %328 = vmatprep.subr.mxu0 0.0
    %329 = vmatpush1.msra.mxu0 0.0
    %330 = vmatprep.subr.mxu0 0.0
    %331 = vmatpush1.msra.mxu0 0.0
    %332 = vmatprep.subr.mxu0 0.0
    %333 = vmatpush1.msra.mxu0 0.0
    %334 = vmatprep.subr.mxu0 0.0
    %335 = vmatpush1.msra.mxu0 0.0
    %336 = vmatprep.subr.mxu0 0.0
    %337 = vmatpush1.msra.mxu0 0.0
    %338 = vmatprep.subr.mxu0 0.0
    %339 = vmatpush1.msra.mxu0 0.0
    %340 = vmatprep.subr.mxu0 0.0
    %341 = vmatpush1.msra.mxu0 0.0
    %342 = vmatprep.subr.mxu0 0.0
    %343 = vmatpush1.msra.mxu0 0.0
    %344 = vmatprep.subr.mxu0 0.0
    %345 = vmatpush1.msra.mxu0 0.0
    %346 = vmatprep.subr.mxu0 0.0
    %347 = vmatpush1.msra.mxu0 0.0
    %348 = vmatprep.subr.mxu0 0.0
    %349 = vmatpush1.msra.mxu0 0.0
    %350 = vmatprep.subr.mxu0 0.0
    %351 = vmatpush1.msra.mxu0 0.0
    %352 = vmatprep.subr.mxu0 0.0
    %353 = vmatpush1.msra.mxu0 0.0
    %354 = vmatprep.subr.mxu0 0.0
    %355 = vmatpush1.msra.mxu0 0.0
    %356 = vmatprep.subr.mxu0 0.0
    %357 = vmatpush1.msra.mxu0 0.0
    %358 = vmatprep.subr.mxu0 0.0
    %359 = vmatpush1.msra.mxu0 0.0
    %360 = vmatprep.subr.mxu0 0.0
    %361 = vmatpush1.msra.mxu0 0.0
    %362 = vmatprep.subr.mxu0 0.0
    %363 = vmatpush1.msra.mxu0 0.0
    %364 = vmatprep.subr.mxu0 0.0
    %365 = vmatpush1.msra.mxu0 0.0
    %366 = vmatprep.subr.mxu0 0.0
    %367 = vmatpush1.msra.mxu0 0.0
    %368 = vmatprep.subr.mxu0 0.0
    %369 = vmatpush1.msra.mxu0 0.0
    %370 = vmatprep.subr.mxu0 0.0
    %371 = vmatpush1.msra.mxu0 0.0
    %372 = vmatprep.subr.mxu0 0.0
    %373 = vmatpush1.msra.mxu0 0.0
    %374 = vmatprep.subr.mxu0 0.0
    %375 = vmatpush1.msra.mxu0 0.0
    %376 = vmatprep.subr.mxu0 0.0
    %377 = vmatpush1.msra.mxu0 0.0
    %378 = vmatprep.subr.mxu0 0.0
    %379 = vmatpush1.msra.mxu0 0.0
    %380 = vmatprep.subr.mxu0 0.0
    %381 = vmatpush1.msra.mxu0 0.0
    %382 = vmatprep.mubr.f32.mxu0 0.0
    %383 = vmatmul.mubr.f32.gmra.mrb[0].mxu0 %v316
    %v384 = vpop.f32.mrb[0].mxu0
    %v385 = vadd.f32 %v311, %v384
    %v386 = vpop.f32.mrb[0].mxu0
    %387 = vdwg.mxu0
    %v388 = vxor.u32 %v385, 2147483648
    %v389 = vmul.f32 %v388, 1.442695
    %v390 = vpow.pop %v389
    %v391 = vadd.f32 %v390, 1.0
    %v392 = vrcp.pop %v391
    %v393 = vmul.f32 1.0, %v392
    %s394 = scalar_lea.vmem %s5, 1
    %v395 = vld [vmem:[%s394] sm:$0x1]
    %v397 = vlaneseq
    %v398 = vshrl.u32 %v397, 7
    %v399 = vsub.s32 0, %v398
    %v400 = vrot.slane %v395, %v399
    %v402 = vmul.f32 %v393, %v400
    %404 = vrot.lane.b32.xlu0 %v402, 64
    %v405 = vpop.permute.xlu0 %404
    %v407 = vadd.f32 %v385, %v405
    %v408 = vtanh.pop %v407
    %v409 = vsub.f32 1.0, %v393
    %411 = vrot.lane.b32.xlu0 %v408, 96
    %v412 = vpop.permute.xlu0 %411
    %v414 = vmul.f32 %v409, %v412
    %416 = vrot.lane.b32.xlu0 %v414, 96
    %v417 = vpop.permute.xlu0 %416
    %419 = vst.msk [vmem:[#allocation12] sm:$0xff] %vm200, %v417
    %v420 = vld [vmem:[#allocation8] sm:$0xff]
    %v421 = vld [vmem:[#allocation8 + $0x8] sm:$0xff]
    %v422 = vld [vmem:[#allocation8 + $0x10] sm:$0xff]
    %v423 = vld [vmem:[#allocation8 + $0x18] sm:$0xff]
    %v424 = vld [vmem:[%s7] sm:$0x1]
    %v426 = vlaneseq
    %v427 = vshrl.u32 %v426, 7
    %v428 = vsub.s32 0, %v427
    %v429 = vrot.slane %v424, %v428
    %v431 = vsel %vm200, %v417, 0
    %433 = vmatprep.subr.mxu0 0.0
    %434 = vmatpush1.msra.mxu0 %v420
    %435 = vmatprep.subr.mxu0 0.0
    %436 = vmatpush1.msra.mxu0 %v421
    %437 = vmatprep.subr.mxu0 0.0
    %438 = vmatpush1.msra.mxu0 %v422
    %439 = vmatprep.subr.mxu0 0.0
    %440 = vmatpush1.msra.mxu0 %v423
    %441 = vmatprep.subr.mxu0 0.0
    %442 = vmatpush1.msra.mxu0 0.0
    %443 = vmatprep.subr.mxu0 0.0
    %444 = vmatpush1.msra.mxu0 0.0
    %445 = vmatprep.subr.mxu0 0.0
    %446 = vmatpush1.msra.mxu0 0.0
    %447 = vmatprep.subr.mxu0 0.0
    %448 = vmatpush1.msra.mxu0 0.0
    %449 = vmatprep.subr.mxu0 0.0
    %450 = vmatpush1.msra.mxu0 0.0
    %451 = vmatprep.subr.mxu0 0.0
    %452 = vmatpush1.msra.mxu0 0.0
    %453 = vmatprep.subr.mxu0 0.0
    %454 = vmatpush1.msra.mxu0 0.0
    %455 = vmatprep.subr.mxu0 0.0
    %456 = vmatpush1.msra.mxu0 0.0
    %457 = vmatprep.subr.mxu0 0.0
    %458 = vmatpush1.msra.mxu0 0.0
    %459 = vmatprep.subr.mxu0 0.0
    %460 = vmatpush1.msra.mxu0 0.0
    %461 = vmatprep.subr.mxu0 0.0
    %462 = vmatpush1.msra.mxu0 0.0
    %463 = vmatprep.subr.mxu0 0.0
    %464 = vmatpush1.msra.mxu0 0.0
    %465 = vmatprep.subr.mxu0 0.0
    %466 = vmatpush1.msra.mxu0 0.0
    %467 = vmatprep.subr.mxu0 0.0
    %468 = vmatpush1.msra.mxu0 0.0
    %469 = vmatprep.subr.mxu0 0.0
    %470 = vmatpush1.msra.mxu0 0.0
    %471 = vmatprep.subr.mxu0 0.0
    %472 = vmatpush1.msra.mxu0 0.0
    %473 = vmatprep.subr.mxu0 0.0
    %474 = vmatpush1.msra.mxu0 0.0
    %475 = vmatprep.subr.mxu0 0.0
    %476 = vmatpush1.msra.mxu0 0.0
    %477 = vmatprep.subr.mxu0 0.0
    %478 = vmatpush1.msra.mxu0 0.0
    %479 = vmatprep.subr.mxu0 0.0
    %480 = vmatpush1.msra.mxu0 0.0
    %481 = vmatprep.subr.mxu0 0.0
    %482 = vmatpush1.msra.mxu0 0.0
    %483 = vmatprep.subr.mxu0 0.0
    %484 = vmatpush1.msra.mxu0 0.0
    %485 = vmatprep.subr.mxu0 0.0
    %486 = vmatpush1.msra.mxu0 0.0
    %487 = vmatprep.subr.mxu0 0.0
    %488 = vmatpush1.msra.mxu0 0.0
    %489 = vmatprep.subr.mxu0 0.0
    %490 = vmatpush1.msra.mxu0 0.0
    %491 = vmatprep.subr.mxu0 0.0
    %492 = vmatpush1.msra.mxu0 0.0
    %493 = vmatprep.subr.mxu0 0.0
    %494 = vmatpush1.msra.mxu0 0.0
    %495 = vmatprep.subr.mxu0 0.0
    %496 = vmatpush1.msra.mxu0 0.0
    %497 = vmatprep.mubr.f32.mxu0 0.0
    %498 = vmatmul.mubr.f32.gmra.mrb[0].mxu0 %v431
    %v499 = vpop.f32.mrb[0].mxu0
    %v500 = vadd.f32 %v429, %v499
    %v501 = vpop.f32.mrb[0].mxu0
    %502 = vdwg.mxu0
    %v503 = vtanh.pop %v500
    %v504 = vld [vmem:[#allocation10] sm:$0xff]
    %v505 = vld [vmem:[#allocation10 + $0x8] sm:$0xff]
    %v506 = vld [vmem:[#allocation10 + $0x10] sm:$0xff]
    %v507 = vld [vmem:[#allocation10 + $0x18] sm:$0xff]
    %v508 = vld [vmem:[#allocation10 + $0x20] sm:$0xff]
    %v509 = vld [vmem:[#allocation10 + $0x28] sm:$0xff]
    %v510 = vld [vmem:[#allocation10 + $0x30] sm:$0xff]
    %v511 = vld [vmem:[#allocation10 + $0x38] sm:$0xff]
    %v512 = vld [vmem:[#allocation10 + $0x40] sm:$0xff]
    %v513 = vld [vmem:[#allocation10 + $0x48] sm:$0xff]
    %v514 = vld [vmem:[#allocation10 + $0x50] sm:$0xff]
    %v515 = vld [vmem:[#allocation10 + $0x58] sm:$0xff]
    %v516 = vld [vmem:[#allocation10 + $0x60] sm:$0xff]
    %v517 = vld [vmem:[#allocation10 + $0x68] sm:$0xff]
    %v518 = vld [vmem:[#allocation10 + $0x70] sm:$0xff]
    %v519 = vld [vmem:[#allocation10 + $0x78] sm:$0xff]
    %v520 = vld [vmem:[%s9] sm:$0x1]
    %v522 = vlaneseq
    %v523 = vshrl.u32 %v522, 7
    %v524 = vsub.s32 0, %v523
    %v525 = vrot.slane %v520, %v524
    %527 = vmatprep.subr.mxu0 0.0
    %528 = vmatpush1.msra.mxu0 %v504
    %529 = vmatprep.subr.mxu0 0.0
    %530 = vmatpush1.msra.mxu0 %v505
    %531 = vmatprep.subr.mxu0 0.0
    %532 = vmatpush1.msra.mxu0 %v506
    %533 = vmatprep.subr.mxu0 0.0
    %534 = vmatpush1.msra.mxu0 %v507
    %535 = vmatprep.subr.mxu0 0.0
    %536 = vmatpush1.msra.mxu0 %v508
    %537 = vmatprep.subr.mxu0 0.0
    %538 = vmatpush1.msra.mxu0 %v509
    %539 = vmatprep.subr.mxu0 0.0
    %540 = vmatpush1.msra.mxu0 %v510
    %541 = vmatprep.subr.mxu0 0.0
    %542 = vmatpush1.msra.mxu0 %v511
    %543 = vmatprep.subr.mxu0 0.0
    %544 = vmatpush1.msra.mxu0 %v512
    %545 = vmatprep.subr.mxu0 0.0
    %546 = vmatpush1.msra.mxu0 %v513
    %547 = vmatprep.subr.mxu0 0.0
    %548 = vmatpush1.msra.mxu0 %v514
    %549 = vmatprep.subr.mxu0 0.0
    %550 = vmatpush1.msra.mxu0 %v515
    %551 = vmatprep.subr.mxu0 0.0
    %552 = vmatpush1.msra.mxu0 %v516
    %553 = vmatprep.subr.mxu0 0.0
    %554 = vmatpush1.msra.mxu0 %v517
    %555 = vmatprep.subr.mxu0 0.0
    %556 = vmatpush1.msra.mxu0 %v518
    %557 = vmatprep.subr.mxu0 0.0
    %558 = vmatpush1.msra.mxu0 %v519
    %559 = vmatprep.subr.mxu0 0.0
    %560 = vmatpush1.msra.mxu0 0.0
    %561 = vmatprep.subr.mxu0 0.0
    %562 = vmatpush1.msra.mxu0 0.0
    %563 = vmatprep.subr.mxu0 0.0
    %564 = vmatpush1.msra.mxu0 0.0
    %565 = vmatprep.subr.mxu0 0.0
    %566 = vmatpush1.msra.mxu0 0.0
    %567 = vmatprep.subr.mxu0 0.0
    %568 = vmatpush1.msra.mxu0 0.0
    %569 = vmatprep.subr.mxu0 0.0
    %570 = vmatpush1.msra.mxu0 0.0
    %571 = vmatprep.subr.mxu0 0.0
    %572 = vmatpush1.msra.mxu0 0.0
    %573 = vmatprep.subr.mxu0 0.0
    %574 = vmatpush1.msra.mxu0 0.0
    %575 = vmatprep.subr.mxu0 0.0
    %576 = vmatpush1.msra.mxu0 0.0
    %577 = vmatprep.subr.mxu0 0.0
    %578 = vmatpush1.msra.mxu0 0.0
    %579 = vmatprep.subr.mxu0 0.0
    %580 = vmatpush1.msra.mxu0 0.0
    %581 = vmatprep.subr.mxu0 0.0
    %582 = vmatpush1.msra.mxu0 0.0
    %583 = vmatprep.subr.mxu0 0.0
    %584 = vmatpush1.msra.mxu0 0.0
    %585 = vmatprep.subr.mxu0 0.0
    %586 = vmatpush1.msra.mxu0 0.0
    %587 = vmatprep.subr.mxu0 0.0
    %588 = vmatpush1.msra.mxu0 0.0
    %589 = vmatprep.subr.mxu0 0.0
    %590 = vmatpush1.msra.mxu0 0.0
    %591 = vmatprep.mubr.f32.mxu0 0.0
    %592 = vmatmul.mubr.f32.gmra.mrb[0].mxu0 %v503
    %v593 = vpop.f32.mrb[0].mxu0
    %v594 = vadd.f32 %v525, %v593
    %v595 = vpop.f32.mrb[0].mxu0
    %596 = vdwg.mxu0
    %v597 = vtanh.pop %v594
    %v598 = vmul.f32 %v597, 3.1415925
    %v599 = vlaneseq
    %v600 = vand.u32 %v599, 127
    %vm601 = vcmp.lt.s32.totalorder %v600, 3
    %v602 = vsel %vm601, %v500, %v598
    %603 = vst [vmem:[#allocation11] sm:$0xff] %v602
    // Predicated region
    $region62: #{tpu_custom_call.1} parent=1 // pred_check
      _
    $region63: #{tpu_custom_call.1} parent=1 // pred_check_branch
      %605 = sbr.rel (0) target = $region65
    $region64: #{tpu_custom_call.1} parent=1 // pred_region
      %s607 = ssub.s32 128, 128
      %608 = vsyncadd [#allocation4], %s607
      %s610 = sshll.u32 [#allocation11], 4
      %s611 = int_to_ptr.vmem [resolvable:$true] %s610
      %613 = dma.vmem_to_hbm [thread:$0]  %s611, 128, %s10, [#allocation4]
    $region65: #{tpu_custom_call.1} parent=1 // pred_fallthru
      _
    // Predicated region
    $region66: #{tpu_custom_call.1} parent=1 // pred_check
      _
    $region67: #{tpu_custom_call.1} parent=1 // pred_check_branch
      %615 = sbr.rel (0) target = $region69
    $region68: #{tpu_custom_call.1} parent=1 // pred_region
      %s617 = ssub.s32 128, 128
      %618 = vsyncadd [#allocation13], %s617
      %s620 = sshll.u32 [#allocation12], 4
      %s621 = int_to_ptr.vmem [resolvable:$true] %s620
      %623 = dma.vmem_to_hbm [thread:$0]  %s621, 128, %s11, [#allocation13]
    $region69: #{tpu_custom_call.1} parent=1 // pred_fallthru
      _
    // Predicated region
    $region70: #{tpu_custom_call.1} parent=1 // pred_check
      _
    $region71: #{tpu_custom_call.1} parent=1 // pred_check_branch
      %625 = sbr.rel (0) target = $region73
    $region72: #{tpu_custom_call.1} parent=1 // pred_region
      %626 = dma.done [#allocation4], 128
    $region73: #{tpu_custom_call.1} parent=1 // pred_fallthru
      _
    // Predicated region
    $region74: #{tpu_custom_call.1} parent=1 // pred_check
      _
    $region75: #{tpu_custom_call.1} parent=1 // pred_check_branch
      %628 = sbr.rel (0) target = $region77
    $region76: #{tpu_custom_call.1} parent=1 // pred_region
      %629 = dma.done [#allocation13], 128
    $region77: #{tpu_custom_call.1} parent=1 // pred_fallthru
      _
    %630 = vsyncpa [#allocation3], 1
    %631 = vsyncpa [#allocation6], 1
    %632 = vsyncpa [#allocation9], 1
    %633 = vsyncpa [#allocation4], 1
    %634 = vsyncpa [#allocation13], 1

</llo_original>
